<compile_context>
chip_gen: v7x
topology: tpu7x:2x2x1
jax: 0.10.0
libtpu: 0.0.40
codegen_flags: <defaults>
</compile_context>

<pallas_src>
import functools

import jax
import jax.numpy as jnp
from jax import lax
from jax.experimental import pallas as pl
from jax.experimental.pallas import tpu as pltpu


_LANE = 128


def _round_up(x, m):
    return (x + m - 1) // m * m


def _sublane_quantum(dtype):
    # (8,128) min tile for 4-byte dtypes, (16,128) for bf16, (32,128) for int8/fp8.
    return max(8, 32 // jnp.dtype(dtype).itemsize)


def _vmem_capacity_bytes():
    try:
        info = pltpu.get_tpu_info()
        cap = int(getattr(info, "vmem_capacity_bytes", 0))
        if cap > 0:
            return cap
    except Exception:
        pass
    return 64 << 20  # conservative fallback (v7x has 64 MiB per TC)


def _num_tensorcores():
    try:
        info = pltpu.get_tpu_info()
        for attr in ("num_cores", "core_count", "tensorcores_per_chip",
                     "num_tensorcores", "cores_per_chip"):
            n = getattr(info, attr, None)
            if isinstance(n, int) and n > 0:
                return n
    except Exception:
        pass
    return 1  # v5e / v6e default; safe (never forces a block split)


# ----------------------------- Pallas kernel -------------------------------


def _affine_kernel(scale_ref, shift_ref, x_ref, o_ref, *, apply_relu):
    # scale/shift: (tr, 1) f32 per-row coefficients; x/o: (tr, t_hw).
    # Single broadcast FMA (+ optional ReLU) — pure stream, VPU far from bound.
    y = x_ref[...] * scale_ref[...] + shift_ref[...]
    if apply_relu:
        y = jnp.maximum(y, 0.0)
    o_ref[...] = y.astype(o_ref.dtype)


# --------------------------- tiling / VMEM budget ---------------------------


def _choose_tiles(nc, hw, itemsize, sub):
    """Pick (tr, t_hw, vmem_limit_bytes) for a pure-streaming rowwise kernel."""
    phys = _vmem_capacity_bytes()
    # Live pipeline VMEM ~= 2 x-bufs + 2 out-bufs of the big block (+ tiny
    # scale/shift).  Budget <= half of physical VMEM and <= 48 MiB.
    budget = min(phys // 2, 48 << 20)
    max_block_bytes = max(budget // 4, 1 << 20)
    # Large blocks amortize the ~0.35us per-grid-step overhead (proportionally
    # biggest on v7x at 3.2 TB/s); ~10 MiB target, capped by the budget.
    target_block_bytes = min(max_block_bytes, 10 << 20)

    if hw >= _LANE:
        t_hw = min((hw // _LANE) * _LANE, 16384)      # lane-dense tile
    else:
        t_hw = hw                                     # degenerate (<128): full dim

    row_bytes = max(t_hw * itemsize, 1)
    if nc >= sub:
        tr = max(sub, (target_block_bytes // row_bytes) // sub * sub)
        tr = min(tr, _round_up(nc, sub))
    else:
        tr = nc                                       # single full-dim row block

    # Give both TensorCores work on multi-TC chips (v7x) only when the grid
    # would otherwise be a single block; never shrink blocks on single-TC
    # v5e/v6e where it just doubles per-step overhead.
    if _num_tensorcores() >= 2 and pl.cdiv(nc, tr) * pl.cdiv(hw, t_hw) < 2:
        if nc >= 2 * sub:
            tr = max(sub, _round_up(pl.cdiv(nc, 2), sub))
        elif hw >= 2 * _LANE:
            t_hw = max(_LANE, _round_up(pl.cdiv(hw, 2), _LANE))

    live = 4 * tr * t_hw * itemsize + 4 * 4 * tr      # x/out double-buffered + s/b
    vmem_limit = int(min(phys, max(live + (4 << 20), 32 << 20)))
    return tr, t_hw, vmem_limit


# ------------------------------- wrappers -----------------------------------


def _apply_rowwise_affine(x4, scale_nc, shift_nc, *, apply_relu=False):
    """out[n,c,h,w] = relu?(x[n,c,h,w] * scale[n,c] + shift[n,c])."""
    N, C, H, W = x4.shape
    NC, HW = N * C, H * W
    x2 = x4.reshape(NC, HW)
    s2 = jnp.asarray(scale_nc, jnp.float32).reshape(NC, 1)
    b2 = jnp.asarray(shift_nc, jnp.float32).reshape(NC, 1)

    itemsize = jnp.dtype(x4.dtype).itemsize
    sub = _sublane_quantum(x4.dtype)
    tr, t_hw, vmem_limit = _choose_tiles(NC, HW, itemsize, sub)
    grid = (pl.cdiv(NC, tr), pl.cdiv(HW, t_hw))

    out2 = pl.pallas_call(
        functools.partial(_affine_kernel, apply_relu=apply_relu),
        out_shape=jax.ShapeDtypeStruct((NC, HW), x4.dtype),
        grid_spec=pltpu.PrefetchScalarGridSpec(
            num_scalar_prefetch=0,
            grid=grid,
            in_specs=[
                # Per-row coefficients stay resident across the HW axis.
                pl.BlockSpec((tr, 1), lambda i, j: (i, 0)),
                pl.BlockSpec((tr, 1), lambda i, j: (i, 0)),
                pl.BlockSpec((tr, t_hw), lambda i, j: (i, j)),
            ],
            out_specs=pl.BlockSpec((tr, t_hw), lambda i, j: (i, j)),
        ),
        compiler_params=pltpu.CompilerParams(
            dimension_semantics=("parallel", "parallel"),
            vmem_limit_bytes=vmem_limit,
        ),
        cost_estimate=pl.CostEstimate(
            flops=2 * NC * HW,
            transcendentals=0,
            bytes_accessed=2 * NC * HW * itemsize + 8 * NC,
        ),
        # In-place on the activation buffer (peak-HBM win; elementwise with an
        # identity block map, so read-before-write per block is guaranteed).
        input_output_aliases={2: 0},
    )(s2, b2, x2)
    return out2.reshape(N, C, H, W)


def dropout2d_custom(x, v=None, *, p=0.5, training=True, frozen_mask=None):
    """Forward pass of Dropout2dCustom.

    x:           (N, C, H, W) NCHW like PyTorch.
    v:           (N, C) uniform samples (the role of torch.rand) — training.
    frozen_mask: optional (1, C) / (C,) boolean keep-mask — eval path.
    """
    N, C = x.shape[0], x.shape[1]
    if (not training) or p == 0.0:
        if frozen_mask is None:
            return x
        keep = jnp.broadcast_to(
            jnp.reshape(frozen_mask, (1, C)).astype(jnp.float32), (N, C))
        scale = keep * (1.0 / (1.0 - p))
        return _apply_rowwise_affine(x, scale, jnp.zeros_like(scale))
    if p >= 1.0:
        # PyTorch's formula degenerates to 0 * inf here; all channels dropped.
        return jnp.zeros_like(x)
    scale = jnp.where(jnp.asarray(v, jnp.float32) > p, 1.0 / (1.0 - p), 0.0)
    return _apply_rowwise_affine(x, scale, jnp.zeros_like(scale))


# -------------------- BasicBlock forward (XLA + Pallas epilogue) ------------


def _conv3x3(x, w, stride):
    return lax.conv_general_dilated(
        x, w, window_strides=(stride, stride), padding=((1, 1), (1, 1)),
        dimension_numbers=("NCHW", "OIHW", "NCHW"))


def _conv1x1(x, w, stride):
    return lax.conv_general_dilated(
        x, w, window_strides=(stride, stride), padding=((0, 0), (0, 0)),
        dimension_numbers=("NCHW", "OIHW", "NCHW"))


def _batchnorm(x, gamma, beta, eps=1e-5):
    # Training-mode BatchNorm2d (batch statistics), default affine init.
    mean = jnp.mean(x, axis=(0, 2, 3), keepdims=True)
    var = jnp.var(x, axis=(0, 2, 3), keepdims=True)
    xhat = (x - mean) * lax.rsqrt(var + eps)
    return xhat * gamma.reshape(1, -1, 1, 1) + beta.reshape(1, -1, 1, 1)


def basic_block_forward(x, params, dropout_v, *, stride=1, dropout_prob=0.1,
                        training=True, eps=1e-5):
    N = x.shape[0]
    out = _conv3x3(x, params["w1"], stride)

    # BN1 (batch stats) folded to a per-channel affine; its apply, the channel
    # dropout and the following ReLU fuse into ONE Pallas pass over the
    # activation (one HBM read + one write instead of three round trips).
    mean = jnp.mean(out, axis=(0, 2, 3))
    var = jnp.var(out, axis=(0, 2, 3))
    a_c = params["g1"] * lax.rsqrt(var + eps)            # (C,)
    b_c = params["b1"] - mean * a_c                      # (C,)
    if training and dropout_prob > 0.0:
        drop = jnp.where(jnp.asarray(dropout_v, jnp.float32) > dropout_prob,
                         1.0 / (1.0 - dropout_prob), 0.0)  # (N, C)
    else:
        drop = jnp.ones((N, a_c.shape[0]), jnp.float32)
    scale_nc = drop * a_c[None, :]
    shift_nc = drop * b_c[None, :]
    out = _apply_rowwise_affine(out, scale_nc, shift_nc, apply_relu=True)

    out = _conv3x3(out, params["w2"], 1)
    out = _batchnorm(out, params["g2"], params["b2"], eps)
    if stride != 1:
        sc = _conv1x1(x, params["ws"], stride)
        sc = _batchnorm(sc, params["gs"], params["bs"], eps)
    else:
        sc = x
    return jax.nn.relu(out + sc)


# ----------------------------------- main ------------------------------------


if __name__ == "__main__":
    keys = jax.random.split(jax.random.PRNGKey(0), 10)

    # 1. Dropout2dCustom training path (lane-aligned HW, no wrapper padding).
    N, C, H, W = 2, 4, 16, 16
    p = 0.5
    x = jax.random.normal(keys[0], (N, C, H, W), dtype=jnp.float32)
    v = jax.random.uniform(keys[1], (N, C), dtype=jnp.float32)
    out = jax.block_until_ready(dropout2d_custom(x, v, p=p, training=True))
    ref = x * (v > p).astype(jnp.float32)[:, :, None, None] / (1.0 - p)
    assert out.shape == x.shape
    assert jnp.allclose(out, ref, atol=1e-6), "training-path mismatch"

    # 2. Small, non-lane-aligned feature map (ragged edge blocks, no pad).
    x_s = jax.random.normal(keys[2], (2, 3, 7, 7), dtype=jnp.float32)
    v_s = jax.random.uniform(keys[3], (2, 3), dtype=jnp.float32)
    out_s = jax.block_until_ready(dropout2d_custom(x_s, v_s, p=0.1, training=True))
    ref_s = x_s * (v_s > 0.1).astype(jnp.float32)[:, :, None, None] / 0.9
    assert jnp.allclose(out_s, ref_s, atol=1e-6), "ragged-path mismatch"

    # 3. Eval path with a frozen per-channel mask.
    frozen = jax.random.uniform(keys[4], (1, C), dtype=jnp.float32) > p
    out_f = jax.block_until_ready(
        dropout2d_custom(x, p=p, training=False, frozen_mask=frozen))
    ref_f = (x * jnp.broadcast_to(frozen, (N, C)).astype(jnp.float32)
             [:, :, None, None] / (1.0 - p))
    assert jnp.allclose(out_f, ref_f, atol=1e-6), "frozen-mask path mismatch"

    # 4. bf16 activations (exercises the (16,128) dtype-aware tiling path).
    x_b = jax.random.normal(keys[5], (2, 16, 16, 16), dtype=jnp.bfloat16)
    v_b = jax.random.uniform(keys[6], (2, 16), dtype=jnp.float32)
    out_b = jax.block_until_ready(dropout2d_custom(x_b, v_b, p=0.5, training=True))
    ref_b = (x_b.astype(jnp.float32)
             * (v_b > 0.5).astype(jnp.float32)[:, :, None, None] * 2.0
             ).astype(jnp.bfloat16)
    assert jnp.allclose(out_b.astype(jnp.float32), ref_b.astype(jnp.float32),
                        atol=1e-2, rtol=2e-2), "bf16-path mismatch"

    # 5. Full BasicBlock forward (conv/bn-stats in XLA, fused epilogue in Pallas).
    dp = 0.1
    params = {
        "w1": 0.1 * jax.random.normal(keys[7], (C, C, 3, 3), dtype=jnp.float32),
        "g1": jnp.ones((C,), jnp.float32), "b1": jnp.zeros((C,), jnp.float32),
        "w2": 0.1 * jax.random.normal(keys[8], (C, C, 3, 3), dtype=jnp.float32),
        "g2": jnp.ones((C,), jnp.float32), "b2": jnp.zeros((C,), jnp.float32),
    }
    vd = jax.random.uniform(keys[9], (N, C), dtype=jnp.float32)
    blk = jax.block_until_ready(
        basic_block_forward(x, params, vd, stride=1, dropout_prob=dp,
                            training=True))

    def _block_ref(xx, pp, vv):
        o = _batchnorm(_conv3x3(xx, pp["w1"], 1), pp["g1"], pp["b1"])
        o = o * (vv > dp).astype(jnp.float32)[:, :, None, None] / (1.0 - dp)
        o = jax.nn.relu(o)
        o = _batchnorm(_conv3x3(o, pp["w2"], 1), pp["g2"], pp["b2"])
        return jax.nn.relu(o + xx)

    ref_blk = _block_ref(x, params, vd)
    assert blk.shape == x.shape
    assert jnp.allclose(blk, ref_blk, atol=1e-4), "BasicBlock mismatch"

    print("KERNEL_OK")
</pallas_src>

<mosaic_0001>
module attributes {stable_mosaic.version = 11 : i64} {
  func.func @_affine_kernel(%arg0: i32, %arg1: i32, %arg2: memref<8x1xf32, #tpu.memory_space<vmem>>, %arg3: memref<8x1xf32, #tpu.memory_space<vmem>>, %arg4: memref<8x256xf32, #tpu.memory_space<vmem>>, %arg5: memref<8x256xf32, #tpu.memory_space<vmem>>) attributes {dimension_semantics = [#tpu.dimension_semantics<parallel>, #tpu.dimension_semantics<parallel>], iteration_bounds = array<i64: 1, 1>, scalar_prefetch = 0 : i64, scratch_operands = 0 : i64, tpu.core_type = #tpu.core_type<tc>, window_params = [{transform_indices = @transform_0, window_bounds = array<i64: 8, 1>}, {transform_indices = @transform_1, window_bounds = array<i64: 8, 1>}, {transform_indices = @transform_2, window_bounds = array<i64: 8, 256>}, {transform_indices = @transform_3, window_bounds = array<i64: 8, 256>}]} {
    %c0 = arith.constant 0 : index
    %c0_0 = arith.constant 0 : index
    %0 = vector.load %arg4[%c0, %c0_0] : memref<8x256xf32, #tpu.memory_space<vmem>>, vector<8x256xf32>
    %c0_1 = arith.constant 0 : index
    %c0_2 = arith.constant 0 : index
    %1 = vector.load %arg2[%c0_1, %c0_2] : memref<8x1xf32, #tpu.memory_space<vmem>>, vector<8x1xf32>
    %2 = vector.broadcast %1 : vector<8x1xf32> to vector<8x256xf32>
    %3 = arith.mulf %0, %2 : vector<8x256xf32>
    %c0_3 = arith.constant 0 : index
    %c0_4 = arith.constant 0 : index
    %4 = vector.load %arg3[%c0_3, %c0_4] : memref<8x1xf32, #tpu.memory_space<vmem>>, vector<8x1xf32>
    %5 = vector.broadcast %4 : vector<8x1xf32> to vector<8x256xf32>
    %6 = arith.addf %3, %5 : vector<8x256xf32>
    %c0_5 = arith.constant 0 : index
    %c0_6 = arith.constant 0 : index
    %7 = vector.load %arg5[%c0_5, %c0_6] : memref<8x256xf32, #tpu.memory_space<vmem>>, vector<8x256xf32>
    tpu.vector_store %arg5[%c0_5, %c0_6], %6 {strides = array<i32>} : memref<8x256xf32, #tpu.memory_space<vmem>>, vector<8x256xf32>,
    return
  }
  func.func @transform_0(%arg0: i32, %arg1: i32) -> (i32, i32) {
    %c0_i32 = arith.constant 0 : i32
    %c0_i32_0 = arith.constant 0 : i32
    return %arg0, %c0_i32 : i32, i32
  }
  func.func @transform_1(%arg0: i32, %arg1: i32) -> (i32, i32) {
    %c0_i32 = arith.constant 0 : i32
    %c0_i32_0 = arith.constant 0 : i32
    return %arg0, %c0_i32 : i32, i32
  }
  func.func @transform_2(%arg0: i32, %arg1: i32) -> (i32, i32) {
    %c0_i32 = arith.constant 0 : i32
    return %arg0, %arg1 : i32, i32
  }
  func.func @transform_3(%arg0: i32, %arg1: i32) -> (i32, i32) {
    %c0_i32 = arith.constant 0 : i32
    return %arg0, %arg1 : i32, i32
  }
}

</mosaic_0001>

<llo_original>
// kernel: tpu_custom_call.1
$region0: #{tpu_custom_call.1}
  #allocation0 [shape = 'u32[]', space=smem, size = 0x4, offset = 0x4, fixed_abs, tag = 'smem constant byte address 0x4 - core index']
  #allocation1 [shape = 'u32[144,128]{1,0:T(1,128)}', space=vmem, size = 0x12000, scoped, tag = 'internal scratch']
  %s0 = inlined_call_operand.vmem [shape: f32[8,1], index: 0, kind: input, shape index: {}]
  %s1 = inlined_call_operand.vmem [shape: f32[8,1], index: 1, kind: input, shape index: {}]
  %s2 = inlined_call_operand.hbm [shape: f32[8,256], index: 2, kind: input, shape index: {}, may-alias: {2,3}]
  %s3 = inlined_call_operand.hbm [shape: f32[8,256], index: 3, kind: output, shape index: {}, may-alias: {2,3}]
  %s4 = sld [smem:[#allocation0]]
  $region26: #{tpu_custom_call.1} parent=0
    _
  %s6 = ssub.s32 1, %s4
  %s7 = scalar_select 0, %s6, %s4
  $region1: #{tpu_custom_call.1} parent=0
    #allocation2 [shape = 'u8[8192]{0}', space=vmem, size = 0x2000, scoped, tag = 'input window, operand 2, single buffered']
    #allocation3 [shape = 's32[1]{0}', space=sflag, size = 0x4, scoped, tag = 'scoped memory for tpu_custom_call.1']
    #allocation4 [shape = 's32[1]{0}', space=sflag, size = 0x4, scoped, tag = 'scoped memory for tpu_custom_call.1']
    #allocation5 [shape = 'u8[8192]{0}', space=vmem, size = 0x2000, scoped, tag = 'output window, operand 0, single buffered']
    %8 = vsyncpa [#allocation3], 0
    %9 = vsyncpa [#allocation4], 0
    // Predicated region
    $region2: #{tpu_custom_call.1} parent=1 // pred_check
      _
    $region3: #{tpu_custom_call.1} parent=1 // pred_check_branch
      %11 = sbr.rel (0) target = $region5
    $region4: #{tpu_custom_call.1} parent=1 // pred_region
      _
    $region5: #{tpu_custom_call.1} parent=1 // pred_fallthru
      _
    // Predicated region
    $region6: #{tpu_custom_call.1} parent=1 // pred_check
      _
    $region7: #{tpu_custom_call.1} parent=1 // pred_check_branch
      %13 = sbr.rel (0) target = $region9
    $region8: #{tpu_custom_call.1} parent=1 // pred_region
      _
    $region9: #{tpu_custom_call.1} parent=1 // pred_fallthru
      _
    // Predicated region
    $region10: #{tpu_custom_call.1} parent=1 // pred_check
      _
    $region11: #{tpu_custom_call.1} parent=1 // pred_check_branch
      %15 = sbr.rel (0) target = $region13
    $region12: #{tpu_custom_call.1} parent=1 // pred_region
      %s17 = ssub.s32 256, 256
      %18 = vsyncadd [#allocation3], %s17
      %s20 = sshll.u32 [#allocation2], 4
      %s21 = int_to_ptr.vmem [resolvable:$true] %s20
      %23 = dma.hbm_to_vmem [thread:$0]  %s2, 256, %s21, [#allocation3]
    $region13: #{tpu_custom_call.1} parent=1 // pred_fallthru
      _
    // Predicated region
    $region14: #{tpu_custom_call.1} parent=1 // pred_check
      _
    $region15: #{tpu_custom_call.1} parent=1 // pred_check_branch
      %25 = sbr.rel (0) target = $region17
    $region16: #{tpu_custom_call.1} parent=1 // pred_region
      %26 = dma.done [#allocation3], 256
    $region17: #{tpu_custom_call.1} parent=1 // pred_fallthru
      _
    %v27 = vld [vmem:[#allocation2] sm:$0xff]
    %v28 = vld [vmem:[#allocation2 + $0x8] sm:$0xff]
    %v29 = vld [vmem:[%s0] sm:$0xff]
    %31 = vset.pattern.permute.xlu0 0
    %32 = vperm.xlu0 %31, %v29
    %v33 = vpop.permute.xlu0 %32
    %v35 = vmul.f32 %v27, %v33
    %v36 = vmul.f32 %v28, %v33
    %v37 = vld [vmem:[%s1] sm:$0xff]
    %39 = vset.pattern.permute.xlu0 0
    %40 = vperm.xlu0 %39, %v37
    %v41 = vpop.permute.xlu0 %40
    %v43 = vadd.f32 %v35, %v41
    %v44 = vadd.f32 %v36, %v41
    %45 = vst [vmem:[#allocation5] sm:$0xff] %v43
    %46 = vst [vmem:[#allocation5 + $0x8] sm:$0xff] %v44
    // Predicated region
    $region18: #{tpu_custom_call.1} parent=1 // pred_check
      _
    $region19: #{tpu_custom_call.1} parent=1 // pred_check_branch
      %48 = sbr.rel (0) target = $region21
    $region20: #{tpu_custom_call.1} parent=1 // pred_region
      %s50 = ssub.s32 256, 256
      %51 = vsyncadd [#allocation4], %s50
      %s53 = sshll.u32 [#allocation5], 4
      %s54 = int_to_ptr.vmem [resolvable:$true] %s53
      %56 = dma.vmem_to_hbm [thread:$0]  %s54, 256, %s3, [#allocation4]
    $region21: #{tpu_custom_call.1} parent=1 // pred_fallthru
      _
    // Predicated region
    $region22: #{tpu_custom_call.1} parent=1 // pred_check
      _
    $region23: #{tpu_custom_call.1} parent=1 // pred_check_branch
      %58 = sbr.rel (0) target = $region25
    $region24: #{tpu_custom_call.1} parent=1 // pred_region
      %59 = dma.done [#allocation4], 256
    $region25: #{tpu_custom_call.1} parent=1 // pred_fallthru
      _
    %60 = vsyncpa [#allocation3], 1
    %61 = vsyncpa [#allocation4], 1

</llo_original>
